<compile_context>
chip_gen: v7x
topology: tpu7x:2x2x1
jax: 0.10.0
libtpu: 0.0.40
codegen_flags: <defaults>
</compile_context>

<pallas_src>
import jax
import jax.numpy as jnp
from jax import lax
from jax.experimental import pallas as pl
from jax.experimental.pallas import tpu as pltpu


def skg_kernel(x_ref, nodesf_ref, wpr_ref, bpm_ref, wgblk_ref, bgblk_ref,
               adj_ref, wbpblk_ref, bbp_ref, out_ref):
    # x_ref:      (1, Bc*S, F)    current batch chunk, rows ordered (b_local, s)
    # nodesf_ref: (N, M*F2)       nodes flattened over the inner M axis
    # wpr_ref:    (F, M*F2)       projection.weight tiled M times (folds the sum over M)
    # bpm_ref:    (1, F)          M * projection.bias
    # wgblk_ref:  (L, Bc*S, Bc*S) per-layer block-diag(Wg^T) over the Bc chunk batches only
    # bgblk_ref:  (L, 1, Bc*S)    per-layer GCN bias tiled Bc times
    # adj_ref:    (N, N)          normalized adjacency D^-1/2 (A+I) D^-1/2 (shared by batches)
    # wbpblk_ref: (Bc, Bc*S)      block-diag(belief_projection.weight)
    # bbp_ref:    (1, 1) [SMEM]   belief_projection.bias scalar
    # out_ref:    (1, Bc, N)
    L = wgblk_ref.shape[0]
    x2 = x_ref[0]                                                        # (Bc*S, F)

    # ---- node projection; the sum over M rides the MXU contraction (no XLU reduce).
    #      Chunk-invariant, but recomputed per chunk (tiny vs. the GCN propagate) so the
    #      chunk grid axis stays embarrassingly parallel for v7x. ----
    nodes_p = lax.dot_general(nodesf_ref[...], wpr_ref[...],
                              (((1,), (1,)), ((), ())),
                              preferred_element_type=jnp.float32)        # (N, F)
    nodes_p = nodes_p + bpm_ref[...]

    # ---- score matrix for the whole chunk, already transposed:
    #      H[n, b*S + s] = sum_f nodes_p[n, f] * x[b, s, f]  = beliefs[b, n, s] ----
    H = lax.dot_general(nodes_p, x2, (((1,), (1,)), ((), ())),
                        preferred_element_type=jnp.float32)              # (N, Bc*S)

    # ---- GCNConv stack: A_hat @ (beliefs @ Wg^T) + bg, then LeakyReLU(0.01) ----
    # Weight contraction over S is one per-chunk block-diag matmul; propagate is shared
    # across the chunk's batches, so it is one (N,N) x (N,Bc*S) matmul per layer.
    for l in range(L):  # static unroll, L = propagation_layers = 3
        h = jnp.dot(H, wgblk_ref[l], preferred_element_type=jnp.float32)     # (N, Bc*S)
        h = jnp.dot(adj_ref[...], h, preferred_element_type=jnp.float32)
        h = h + bgblk_ref[l]
        H = jnp.maximum(h, 0.01 * h)                                     # LeakyReLU, 1 VALU op

    # ---- belief projection Linear(S -> 1) on the MXU + squeeze; one dense (Bc, N) store ----
    out = lax.dot_general(wbpblk_ref[...], H, (((1,), (1,)), ((), ())),
                          preferred_element_type=jnp.float32)            # (Bc, N)
    out_ref[0] = out + bbp_ref[0, 0]


def skg_chunk_batches(B, S, target_lanes=256):
    """Pick Bc so the fused lane width Bc*S targets ~256 lanes (128 suffices on v5e)."""
    Bc = max(1, min(B, max(1, target_lanes // S)))
    while B % Bc:            # shrink to a divisor of B
        Bc -= 1
    return Bc


def prepare_skg_weights(wp, bp, wg, bg, wbp, *, num_node_inner, chunk_batches):
    """Static per-(model, chunk-size) weight prep: O(L*(Bc*S)^2), independent of batch size.
    Hoist this out of the per-step path at production (weights do not change per call)."""
    L, S, _ = wg.shape
    M, Bc = num_node_inner, chunk_batches
    eye_c = jnp.eye(Bc, dtype=wg.dtype)
    return dict(
        wp_rep=jnp.tile(wp, (1, M)),                                      # (F, M*F2)
        bp_m=float(M) * bp,                                               # (1, F)
        wg_blk=jnp.stack([jnp.kron(eye_c, wg[l].T) for l in range(L)]),   # (L, Bc*S, Bc*S)
        bg_blk=jnp.tile(bg[:, 0, :], (1, Bc))[:, None, :],                # (L, 1, Bc*S)
        wbp_blk=jnp.kron(eye_c, wbp),                                     # (Bc, Bc*S)
    )


def skg_forward(x, nodes, adj_hat, bbp, weights):
    """Fused SKGModule forward (eval mode). `weights` comes from prepare_skg_weights."""
    B, S, F = x.shape
    N, M, F2 = nodes.shape
    wg_blk, wbp_blk = weights["wg_blk"], weights["wbp_blk"]
    L, BS, _ = wg_blk.shape
    Bc = wbp_blk.shape[0]
    assert BS == Bc * S and B % Bc == 0
    C = B // Bc                                   # number of batch chunks = grid size

    nodes_flat = nodes.reshape(N, M * F2)         # contiguous reshape (batch-invariant glue)
    x_chunks = x.reshape(C, BS, F)                # chunk c covers batches [c*Bc, (c+1)*Bc)

    args = (x_chunks, nodes_flat, weights["wp_rep"], weights["bp_m"],
            wg_blk, weights["bg_blk"], adj_hat, wbp_blk, bbp)
    out_shape = jax.ShapeDtypeStruct((C, Bc, N), jnp.float32)
    vmem = pl.BlockSpec(memory_space=pltpu.MemorySpace.VMEM)
    smem = pl.BlockSpec(memory_space=pltpu.MemorySpace.SMEM)

    if C == 1:
        # Single chunk: grid-less call -> no pipeline prologue/epilogue and no double-buffered
        # copies of the operands (per perf review for the small-shape regime).
        out = pl.pallas_call(
            skg_kernel,
            out_shape=out_shape,
            in_specs=[vmem] * 8 + [smem],
            out_specs=vmem,
        )(*args)
    else:
        # Batch-chunked grid; chunks are independent -> "parallel" lets v7x's two TensorCores
        # split them. Chunk-invariant operands use constant index maps (stay VMEM-resident).
        out = pl.pallas_call(
            skg_kernel,
            out_shape=out_shape,
            grid=(C,),
            in_specs=[
                pl.BlockSpec((1, BS, F), lambda c: (c, 0, 0)),           # x chunk (varies)
                pl.BlockSpec((N, M * F2), lambda c: (0, 0)),             # nodes (chunk-invariant)
                pl.BlockSpec((F, M * F2), lambda c: (0, 0)),             # tiled projection weight
                pl.BlockSpec((1, F), lambda c: (0, 0)),                  # M * projection bias
                pl.BlockSpec((L, BS, BS), lambda c: (0, 0, 0)),          # per-chunk block-diag Wg^T
                pl.BlockSpec((L, 1, BS), lambda c: (0, 0, 0)),           # tiled GCN bias
                pl.BlockSpec((N, N), lambda c: (0, 0)),                  # normalized adjacency
                pl.BlockSpec((Bc, BS), lambda c: (0, 0)),                # block-diag wbp
                smem,                                                    # bbp scalar (SMEM)
            ],
            out_specs=pl.BlockSpec((1, Bc, N), lambda c: (c, 0, 0)),
            compiler_params=pltpu.CompilerParams(
                dimension_semantics=("parallel",)),
        )(*args)
    return out.reshape(B, N)


def reference_forward(x, nodes, wp, bp, wg, bg, adj_hat, wbp, bbp):
    """Plain-JAX reference mirroring the PyTorch forward (eval mode)."""
    proj = jnp.einsum('nmf,gf->nmg', nodes, wp) + bp[0]                  # Linear(F2->F) on nodes
    score = jnp.einsum('ijk,lmk->ijl', x, proj)                          # (B, S, N)
    beliefs = jnp.transpose(score, (0, 2, 1))                            # (B, N, S)
    for l in range(wg.shape[0]):
        h = jnp.einsum('bns,os->bno', beliefs, wg[l])                    # GCN linear
        h = jnp.einsum('ij,bjs->bis', adj_hat, h) + bg[l][0]             # propagate + bias
        beliefs = jnp.where(h > 0, h, 0.01 * h)                          # LeakyReLU
    return jnp.einsum('bns,s->bn', beliefs, wbp[0]) + bbp[0, 0]          # belief_projection[:, :, 0]


def make_ring_adjacency(N):
    """Synthetic bidirectional-ring graph -> dense A_hat = D^-1/2 (A + I) D^-1/2 (PyG gcn_norm)."""
    idx = jnp.arange(N)
    src = jnp.concatenate([idx, (idx + 1) % N])
    dst = jnp.concatenate([(idx + 1) % N, idx])
    A = jnp.zeros((N, N), jnp.float32).at[dst, src].add(1.0) + jnp.eye(N, dtype=jnp.float32)
    dinv = lax.rsqrt(A.sum(axis=1))
    return dinv[:, None] * A * dinv[None, :]


if __name__ == "__main__":
    # Small shapes consistent with the module.
    S, F, F2 = 8, 32, 16                # sequence_length, in_features, in_features2
    N, M, L = 16, 4, 3                  # graph nodes, inner node dim, propagation_layers

    key = jax.random.PRNGKey(0)
    ks = jax.random.split(key, 10)
    nodes = jax.random.normal(ks[1], (N, M, F2), jnp.float32)

    # Parameters (deterministic synthetic init).
    wp = 0.1 * jax.random.normal(ks[2], (F, F2), jnp.float32)    # projection.weight (out, in)
    bp = 0.1 * jax.random.normal(ks[3], (1, F), jnp.float32)     # projection.bias
    wg = 0.1 * jax.random.normal(ks[4], (L, S, S), jnp.float32)  # GCNConv lin.weight per layer
    bg = 0.1 * jax.random.normal(ks[5], (L, 1, S), jnp.float32)  # GCNConv bias per layer
    wbp = 0.1 * jax.random.normal(ks[6], (1, S), jnp.float32)    # belief_projection.weight
    bbp = 0.1 * jax.random.normal(ks[7], (1, 1), jnp.float32)    # belief_projection.bias
    adj_hat = make_ring_adjacency(N)

    # --- test 1: B=2 -> single chunk -> grid-less fused call ---
    B = 2
    x = jax.random.normal(ks[0], (B, S, F), jnp.float32)
    Bc = skg_chunk_batches(B, S)                                  # = 2 -> one chunk
    w = prepare_skg_weights(wp, bp, wg, bg, wbp, num_node_inner=M, chunk_batches=Bc)
    out = jax.block_until_ready(skg_forward(x, nodes, adj_hat, bbp, w))
    ref = reference_forward(x, nodes, wp, bp, wg, bg, adj_hat, wbp, bbp)
    assert out.shape == (B, N)
    assert jnp.allclose(out, ref, atol=1e-4, rtol=1e-4), (out, ref)

    # --- test 2: B=4 with Bc=2 -> two batch chunks -> "parallel" batch-chunked grid path ---
    B2 = 4
    x2 = jax.random.normal(ks[8], (B2, S, F), jnp.float32)
    w2 = prepare_skg_weights(wp, bp, wg, bg, wbp, num_node_inner=M, chunk_batches=2)
    out2 = jax.block_until_ready(skg_forward(x2, nodes, adj_hat, bbp, w2))
    ref2 = reference_forward(x2, nodes, wp, bp, wg, bg, adj_hat, wbp, bbp)
    assert out2.shape == (B2, N)
    assert jnp.allclose(out2, ref2, atol=1e-4, rtol=1e-4), (out2, ref2)

    print("KERNEL_OK")
</pallas_src>

<mosaic_0001>
module attributes {stable_mosaic.version = 11 : i64} {
  func.func @skg_kernel(%arg0: memref<1x16x32xf32, #tpu.memory_space<vmem>>, %arg1: memref<16x64xf32, #tpu.memory_space<vmem>>, %arg2: memref<32x64xf32, #tpu.memory_space<vmem>>, %arg3: memref<1x32xf32, #tpu.memory_space<vmem>>, %arg4: memref<3x16x16xf32, #tpu.memory_space<vmem>>, %arg5: memref<3x1x16xf32, #tpu.memory_space<vmem>>, %arg6: memref<16x16xf32, #tpu.memory_space<vmem>>, %arg7: memref<2x16xf32, #tpu.memory_space<vmem>>, %arg8: memref<1x1xf32, #tpu.memory_space<smem>>, %arg9: memref<1x2x16xf32, #tpu.memory_space<vmem>>) attributes {dimension_semantics = [], scalar_prefetch = 0 : i64, scratch_operands = 0 : i64, tpu.core_type = #tpu.core_type<tc>} {
    %c0 = arith.constant 0 : index
    %c0_0 = arith.constant 0 : index
    %c0_1 = arith.constant 0 : index
    %0 = vector.load %arg0[%c0, %c0_0, %c0_1] : memref<1x16x32xf32, #tpu.memory_space<vmem>>, vector<1x16x32xf32>
    %1 = vector.shape_cast %0 : vector<1x16x32xf32> to vector<16x32xf32>
    %c0_2 = arith.constant 0 : index
    %c0_3 = arith.constant 0 : index
    %2 = vector.load %arg1[%c0_2, %c0_3] : memref<16x64xf32, #tpu.memory_space<vmem>>, vector<16x64xf32>
    %c0_4 = arith.constant 0 : index
    %c0_5 = arith.constant 0 : index
    %3 = vector.load %arg2[%c0_4, %c0_5] : memref<32x64xf32, #tpu.memory_space<vmem>>, vector<32x64xf32>
    %cst = arith.constant dense<0.000000e+00> : vector<16x32xf32>
    %4 = tpu.matmul %2, %3, %cst {dimension_numbers = #tpu.dot_dimension_numbers<[1], [1], [0], [0], [0, 0, 1, 0], [], []>} : vector<16x64xf32>, vector<32x64xf32>, vector<16x32xf32> -> vector<16x32xf32>
    %c0_6 = arith.constant 0 : index
    %c0_7 = arith.constant 0 : index
    %5 = vector.load %arg3[%c0_6, %c0_7] : memref<1x32xf32, #tpu.memory_space<vmem>>, vector<1x32xf32>
    %6 = vector.broadcast %5 : vector<1x32xf32> to vector<16x32xf32>
    %7 = arith.addf %4, %6 : vector<16x32xf32>
    %cst_8 = arith.constant dense<0.000000e+00> : vector<16x16xf32>
    %8 = tpu.matmul %7, %1, %cst_8 {dimension_numbers = #tpu.dot_dimension_numbers<[1], [1], [0], [0], [0, 0, 1, 0], [], []>} : vector<16x32xf32>, vector<16x32xf32>, vector<16x16xf32> -> vector<16x16xf32>
    %c0_9 = arith.constant 0 : index
    %c0_10 = arith.constant 0 : index
    %c0_11 = arith.constant 0 : index
    %9 = vector.load %arg4[%c0_9, %c0_10, %c0_11] : memref<3x16x16xf32, #tpu.memory_space<vmem>>, vector<1x16x16xf32>
    %10 = vector.shape_cast %9 : vector<1x16x16xf32> to vector<16x16xf32>
    %cst_12 = arith.constant dense<0.000000e+00> : vector<16x16xf32>
    %11 = tpu.matmul %8, %10, %cst_12 {dimension_numbers = #tpu.dot_dimension_numbers<[1], [0], [0], [1], [0, 0, 1, 1], [], []>} : vector<16x16xf32>, vector<16x16xf32>, vector<16x16xf32> -> vector<16x16xf32>
    %c0_13 = arith.constant 0 : index
    %c0_14 = arith.constant 0 : index
    %12 = vector.load %arg6[%c0_13, %c0_14] : memref<16x16xf32, #tpu.memory_space<vmem>>, vector<16x16xf32>
    %cst_15 = arith.constant dense<0.000000e+00> : vector<16x16xf32>
    %13 = tpu.matmul %12, %11, %cst_15 {dimension_numbers = #tpu.dot_dimension_numbers<[1], [0], [0], [1], [0, 0, 1, 1], [], []>} : vector<16x16xf32>, vector<16x16xf32>, vector<16x16xf32> -> vector<16x16xf32>
    %c0_16 = arith.constant 0 : index
    %c0_17 = arith.constant 0 : index
    %c0_18 = arith.constant 0 : index
    %14 = vector.load %arg5[%c0_16, %c0_17, %c0_18] : memref<3x1x16xf32, #tpu.memory_space<vmem>>, vector<1x1x16xf32>
    %15 = vector.shape_cast %14 : vector<1x1x16xf32> to vector<1x16xf32>
    %16 = vector.broadcast %15 : vector<1x16xf32> to vector<16x16xf32>
    %17 = arith.addf %13, %16 : vector<16x16xf32>
    %cst_19 = arith.constant 0.00999999977 : f32
    %18 = vector.broadcast %cst_19 : f32 to vector<16x16xf32>
    %19 = arith.mulf %18, %17 : vector<16x16xf32>
    %20 = arith.maximumf %17, %19 : vector<16x16xf32>
    %c1 = arith.constant 1 : index
    %c0_20 = arith.constant 0 : index
    %c0_21 = arith.constant 0 : index
    %21 = vector.load %arg4[%c1, %c0_20, %c0_21] : memref<3x16x16xf32, #tpu.memory_space<vmem>>, vector<1x16x16xf32>
    %22 = vector.shape_cast %21 : vector<1x16x16xf32> to vector<16x16xf32>
    %cst_22 = arith.constant dense<0.000000e+00> : vector<16x16xf32>
    %23 = tpu.matmul %20, %22, %cst_22 {dimension_numbers = #tpu.dot_dimension_numbers<[1], [0], [0], [1], [0, 0, 1, 1], [], []>} : vector<16x16xf32>, vector<16x16xf32>, vector<16x16xf32> -> vector<16x16xf32>
    %c0_23 = arith.constant 0 : index
    %c0_24 = arith.constant 0 : index
    %24 = vector.load %arg6[%c0_23, %c0_24] : memref<16x16xf32, #tpu.memory_space<vmem>>, vector<16x16xf32>
    %cst_25 = arith.constant dense<0.000000e+00> : vector<16x16xf32>
    %25 = tpu.matmul %24, %23, %cst_25 {dimension_numbers = #tpu.dot_dimension_numbers<[1], [0], [0], [1], [0, 0, 1, 1], [], []>} : vector<16x16xf32>, vector<16x16xf32>, vector<16x16xf32> -> vector<16x16xf32>
    %c1_26 = arith.constant 1 : index
    %c0_27 = arith.constant 0 : index
    %c0_28 = arith.constant 0 : index
    %26 = vector.load %arg5[%c1_26, %c0_27, %c0_28] : memref<3x1x16xf32, #tpu.memory_space<vmem>>, vector<1x1x16xf32>
    %27 = vector.shape_cast %26 : vector<1x1x16xf32> to vector<1x16xf32>
    %28 = vector.broadcast %27 : vector<1x16xf32> to vector<16x16xf32>
    %29 = arith.addf %25, %28 : vector<16x16xf32>
    %cst_29 = arith.constant 0.00999999977 : f32
    %30 = vector.broadcast %cst_29 : f32 to vector<16x16xf32>
    %31 = arith.mulf %30, %29 : vector<16x16xf32>
    %32 = arith.maximumf %29, %31 : vector<16x16xf32>
    %c2 = arith.constant 2 : index
    %c0_30 = arith.constant 0 : index
    %c0_31 = arith.constant 0 : index
    %33 = vector.load %arg4[%c2, %c0_30, %c0_31] : memref<3x16x16xf32, #tpu.memory_space<vmem>>, vector<1x16x16xf32>
    %34 = vector.shape_cast %33 : vector<1x16x16xf32> to vector<16x16xf32>
    %cst_32 = arith.constant dense<0.000000e+00> : vector<16x16xf32>
    %35 = tpu.matmul %32, %34, %cst_32 {dimension_numbers = #tpu.dot_dimension_numbers<[1], [0], [0], [1], [0, 0, 1, 1], [], []>} : vector<16x16xf32>, vector<16x16xf32>, vector<16x16xf32> -> vector<16x16xf32>
    %c0_33 = arith.constant 0 : index
    %c0_34 = arith.constant 0 : index
    %36 = vector.load %arg6[%c0_33, %c0_34] : memref<16x16xf32, #tpu.memory_space<vmem>>, vector<16x16xf32>
    %cst_35 = arith.constant dense<0.000000e+00> : vector<16x16xf32>
    %37 = tpu.matmul %36, %35, %cst_35 {dimension_numbers = #tpu.dot_dimension_numbers<[1], [0], [0], [1], [0, 0, 1, 1], [], []>} : vector<16x16xf32>, vector<16x16xf32>, vector<16x16xf32> -> vector<16x16xf32>
    %c2_36 = arith.constant 2 : index
    %c0_37 = arith.constant 0 : index
    %c0_38 = arith.constant 0 : index
    %38 = vector.load %arg5[%c2_36, %c0_37, %c0_38] : memref<3x1x16xf32, #tpu.memory_space<vmem>>, vector<1x1x16xf32>
    %39 = vector.shape_cast %38 : vector<1x1x16xf32> to vector<1x16xf32>
    %40 = vector.broadcast %39 : vector<1x16xf32> to vector<16x16xf32>
    %41 = arith.addf %37, %40 : vector<16x16xf32>
    %cst_39 = arith.constant 0.00999999977 : f32
    %42 = vector.broadcast %cst_39 : f32 to vector<16x16xf32>
    %43 = arith.mulf %42, %41 : vector<16x16xf32>
    %44 = arith.maximumf %41, %43 : vector<16x16xf32>
    %c0_40 = arith.constant 0 : index
    %c0_41 = arith.constant 0 : index
    %45 = vector.load %arg7[%c0_40, %c0_41] : memref<2x16xf32, #tpu.memory_space<vmem>>, vector<2x16xf32>
    %cst_42 = arith.constant dense<0.000000e+00> : vector<2x16xf32>
    %46 = tpu.matmul %45, %44, %cst_42 {dimension_numbers = #tpu.dot_dimension_numbers<[1], [1], [0], [0], [0, 0, 1, 0], [], []>} : vector<2x16xf32>, vector<16x16xf32>, vector<2x16xf32> -> vector<2x16xf32>
    %c0_43 = arith.constant 0 : index
    %c0_44 = arith.constant 0 : index
    %47 = memref.load %arg8[%c0_43, %c0_44] : memref<1x1xf32, #tpu.memory_space<smem>>
    %48 = vector.broadcast %47 : f32 to vector<2x16xf32>
    %49 = arith.addf %46, %48 : vector<2x16xf32>
    %c0_45 = arith.constant 0 : index
    %c0_46 = arith.constant 0 : index
    %c0_47 = arith.constant 0 : index
    %50 = vector.load %arg9[%c0_45, %c0_46, %c0_47] : memref<1x2x16xf32, #tpu.memory_space<vmem>>, vector<1x2x16xf32>
    %51 = vector.shape_cast %50 : vector<1x2x16xf32> to vector<2x16xf32>
    %52 = vector.shape_cast %49 : vector<2x16xf32> to vector<1x2x16xf32>
    tpu.vector_store %arg9[%c0_45, %c0_46, %c0_47], %52 {strides = array<i32>} : memref<1x2x16xf32, #tpu.memory_space<vmem>>, vector<1x2x16xf32>,
    return
  }
}

</mosaic_0001>

<llo_original>
// kernel: tpu_custom_call.1
$region0: #{tpu_custom_call.1}
  #allocation0 [shape = 'u32[]', space=smem, size = 0x4, offset = 0x4, fixed_abs, tag = 'smem constant byte address 0x4 - core index']
  #allocation1 [shape = 'u32[144,128]{1,0:T(1,128)}', space=vmem, size = 0x12000, scoped, tag = 'internal scratch']
  #allocation2 [shape = 'f32[1,1]{1,0:T(1,128)S(6)}', space=smem, size = 0x200, scoped, tag = 'scoped memory for tpu_custom_call.1']
  %s0 = inlined_call_operand.hbm [shape: f32[1,16,32], index: 0, kind: input, shape index: {}]
  %s1 = inlined_call_operand.hbm [shape: f32[16,64], index: 1, kind: input, shape index: {}]
  %s2 = inlined_call_operand.hbm [shape: f32[32,64], index: 2, kind: input, shape index: {}]
  %s3 = inlined_call_operand.vmem [shape: f32[1,32], index: 3, kind: input, shape index: {}]
  %s4 = inlined_call_operand.hbm [shape: f32[3,16,16], index: 4, kind: input, shape index: {}]
  %s5 = inlined_call_operand.vmem [shape: f32[3,1,16], index: 5, kind: input, shape index: {}]
  %s6 = inlined_call_operand.vmem [shape: f32[16,16], index: 6, kind: input, shape index: {}]
  %s7 = inlined_call_operand.vmem [shape: f32[2,16], index: 7, kind: input, shape index: {}]
  %s8 = inlined_call_operand.<no memory space> [shape: f32[1,1], index: 8, kind: input, shape index: {}]
  %s9 = inlined_call_operand.hbm [shape: f32[1,2,16], index: 9, kind: output, shape index: {}]
  %s10 = sld [smem:[#allocation0]]
  $region62: #{tpu_custom_call.1} parent=0
    _
  %s12 = ssub.s32 1, %s10
  %s13 = scalar_select 0, %s12, %s10
  %14 = sst [smem:[#allocation2]] %s8
  $region1: #{tpu_custom_call.1} parent=0
    #allocation3 [shape = 'u8[8192]{0}', space=vmem, size = 0x2000, scoped, tag = 'input window, operand 0, single buffered']
    #allocation4 [shape = 's32[1]{0}', space=sflag, size = 0x4, scoped, tag = 'scoped memory for tpu_custom_call.1']
    #allocation5 [shape = 's32[1]{0}', space=sflag, size = 0x4, scoped, tag = 'scoped memory for tpu_custom_call.1']
    #allocation6 [shape = 'u8[8192]{0}', space=vmem, size = 0x2000, scoped, tag = 'input window, operand 1, single buffered']
    #allocation7 [shape = 's32[1]{0}', space=sflag, size = 0x4, scoped, tag = 'scoped memory for tpu_custom_call.1']
    #allocation8 [shape = 'u8[16384]{0}', space=vmem, size = 0x4000, scoped, tag = 'input window, operand 2, single buffered']
    #allocation9 [shape = 'u8[24576]{0}', space=vmem, size = 0x6000, scoped, tag = 'input window, operand 4, single buffered']
    #allocation10 [shape = 's32[1]{0}', space=sflag, size = 0x4, scoped, tag = 'scoped memory for tpu_custom_call.1']
    #allocation11 [shape = 'u8[1024]{0}', space=vmem, size = 0x400, scoped, tag = 'output window, operand 0, single buffered']
    %15 = vsyncpa [#allocation4], 0
    %16 = vsyncpa [#allocation7], 0
    %17 = vsyncpa [#allocation10], 0
    %18 = vsyncpa [#allocation5], 0
    // Predicated region
    $region2: #{tpu_custom_call.1} parent=1 // pred_check
      _
    $region3: #{tpu_custom_call.1} parent=1 // pred_check_branch
      %20 = sbr.rel (0) target = $region5
    $region4: #{tpu_custom_call.1} parent=1 // pred_region
      %s22 = ssub.s32 256, 256
      %23 = vsyncadd [#allocation4], %s22
      %s24 = sshll.u32 [#allocation3], 4
      %s25 = int_to_ptr.vmem [resolvable:$true] %s24
      %30 = dma.hbm_to_vmem [thread:$0]  %s0, 256, %s25, [#allocation4], 128, 128, 8
    $region5: #{tpu_custom_call.1} parent=1 // pred_fallthru
      _
    // Predicated region
    $region6: #{tpu_custom_call.1} parent=1 // pred_check
      _
    $region7: #{tpu_custom_call.1} parent=1 // pred_check_branch
      %32 = sbr.rel (0) target = $region9
    $region8: #{tpu_custom_call.1} parent=1 // pred_region
      %s34 = ssub.s32 256, 256
      %35 = vsyncadd [#allocation7], %s34
      %s36 = sshll.u32 [#allocation6], 4
      %s37 = int_to_ptr.vmem [resolvable:$true] %s36
      %42 = dma.hbm_to_vmem [thread:$0]  %s1, 256, %s37, [#allocation7], 128, 128, 8
    $region9: #{tpu_custom_call.1} parent=1 // pred_fallthru
      _
    // Predicated region
    $region10: #{tpu_custom_call.1} parent=1 // pred_check
      _
    $region11: #{tpu_custom_call.1} parent=1 // pred_check_branch
      %44 = sbr.rel (0) target = $region13
    $region12: #{tpu_custom_call.1} parent=1 // pred_region
      %s46 = ssub.s32 512, 512
      %47 = vsyncadd [#allocation7], %s46
      %s48 = sshll.u32 [#allocation8], 4
      %s49 = int_to_ptr.vmem [resolvable:$true] %s48
      %54 = dma.hbm_to_vmem [thread:$0]  %s2, 512, %s49, [#allocation7], 128, 128, 8
    $region13: #{tpu_custom_call.1} parent=1 // pred_fallthru
      _
    // Predicated region
    $region14: #{tpu_custom_call.1} parent=1 // pred_check
      _
    $region15: #{tpu_custom_call.1} parent=1 // pred_check_branch
      %56 = sbr.rel (0) target = $region17
    $region16: #{tpu_custom_call.1} parent=1 // pred_region
      _
    $region17: #{tpu_custom_call.1} parent=1 // pred_fallthru
      _
    // Predicated region
    $region18: #{tpu_custom_call.1} parent=1 // pred_check
      _
    $region19: #{tpu_custom_call.1} parent=1 // pred_check_branch
      %58 = sbr.rel (0) target = $region21
    $region20: #{tpu_custom_call.1} parent=1 // pred_region
      %s60 = ssub.s32 768, 768
      %61 = vsyncadd [#allocation10], %s60
      %s62 = sshll.u32 [#allocation9], 4
      %s63 = int_to_ptr.vmem [resolvable:$true] %s62
      %68 = dma.hbm_to_vmem [thread:$0]  %s4, 768, %s63, [#allocation10], 128, 128, 8
    $region21: #{tpu_custom_call.1} parent=1 // pred_fallthru
      _
    // Predicated region
    $region22: #{tpu_custom_call.1} parent=1 // pred_check
      _
    $region23: #{tpu_custom_call.1} parent=1 // pred_check_branch
      %70 = sbr.rel (0) target = $region25
    $region24: #{tpu_custom_call.1} parent=1 // pred_region
      _
    $region25: #{tpu_custom_call.1} parent=1 // pred_fallthru
      _
    // Predicated region
    $region26: #{tpu_custom_call.1} parent=1 // pred_check
      _
    $region27: #{tpu_custom_call.1} parent=1 // pred_check_branch
      %72 = sbr.rel (0) target = $region29
    $region28: #{tpu_custom_call.1} parent=1 // pred_region
      _
    $region29: #{tpu_custom_call.1} parent=1 // pred_fallthru
      _
    // Predicated region
    $region30: #{tpu_custom_call.1} parent=1 // pred_check
      _
    $region31: #{tpu_custom_call.1} parent=1 // pred_check_branch
      %74 = sbr.rel (0) target = $region33
    $region32: #{tpu_custom_call.1} parent=1 // pred_region
      _
    $region33: #{tpu_custom_call.1} parent=1 // pred_fallthru
      _
    // Predicated region
    $region34: #{tpu_custom_call.1} parent=1 // pred_check
      _
    $region35: #{tpu_custom_call.1} parent=1 // pred_check_branch
      %76 = sbr.rel (0) target = $region37
    $region36: #{tpu_custom_call.1} parent=1 // pred_region
      _
    $region37: #{tpu_custom_call.1} parent=1 // pred_fallthru
      _
    // Predicated region
    $region38: #{tpu_custom_call.1} parent=1 // pred_check
      _
    $region39: #{tpu_custom_call.1} parent=1 // pred_check_branch
      %78 = sbr.rel (0) target = $region41
    $region40: #{tpu_custom_call.1} parent=1 // pred_region
      %79 = dma.done [#allocation4], 256
    $region41: #{tpu_custom_call.1} parent=1 // pred_fallthru
      _
    // Predicated region
    $region42: #{tpu_custom_call.1} parent=1 // pred_check
      _
    $region43: #{tpu_custom_call.1} parent=1 // pred_check_branch
      %81 = sbr.rel (0) target = $region45
    $region44: #{tpu_custom_call.1} parent=1 // pred_region
      %82 = dma.done [#allocation7], 256
    $region45: #{tpu_custom_call.1} parent=1 // pred_fallthru
      _
    // Predicated region
    $region46: #{tpu_custom_call.1} parent=1 // pred_check
      _
    $region47: #{tpu_custom_call.1} parent=1 // pred_check_branch
      %84 = sbr.rel (0) target = $region49
    $region48: #{tpu_custom_call.1} parent=1 // pred_region
      %85 = dma.done [#allocation7], 512
    $region49: #{tpu_custom_call.1} parent=1 // pred_fallthru
      _
    // Predicated region
    $region50: #{tpu_custom_call.1} parent=1 // pred_check
      _
    $region51: #{tpu_custom_call.1} parent=1 // pred_check_branch
      %87 = sbr.rel (0) target = $region53
    $region52: #{tpu_custom_call.1} parent=1 // pred_region
      %88 = dma.done [#allocation10], 768
    $region53: #{tpu_custom_call.1} parent=1 // pred_fallthru
      _
    %v89 = vld [vmem:[#allocation3] sm:$0xff]
    %v90 = vld [vmem:[#allocation3 + $0x8] sm:$0xff]
    %v91 = vld [vmem:[#allocation6] sm:$0xff]
    %v92 = vld [vmem:[#allocation6 + $0x8] sm:$0xff]
    %v93 = vld [vmem:[#allocation8] sm:$0xff]
    %v94 = vld [vmem:[#allocation8 + $0x8] sm:$0xff]
    %v95 = vld [vmem:[#allocation8 + $0x10] sm:$0xff]
    %v96 = vld [vmem:[#allocation8 + $0x18] sm:$0xff]
    %v97 = vld [vmem:[%s3] sm:$0x1]
    %v99 = vlaneseq
    %v100 = vshrl.u32 %v99, 7
    %v101 = vsub.s32 0, %v100
    %v102 = vrot.slane %v97, %v101
    %vm104 = vcmask 523264
    %v106 = vsel %vm104, %v91, 0
    %v109 = vsel %vm104, %v92, 0
    %v112 = vsel %vm104, %v93, 0
    %v115 = vsel %vm104, %v94, 0
    %v118 = vsel %vm104, %v95, 0
    %v121 = vsel %vm104, %v96, 0
    %123 = vmatprep.subr.mxu0 0.0
    %124 = vmatpush1.xpose.msra.mxu0 %v112
    %125 = vmatprep.subr.mxu0 0.0
    %126 = vmatpush1.xpose.msra.mxu0 %v115
    %127 = vmatprep.subr.mxu0 0.0
    %128 = vmatpush1.xpose.msra.mxu0 %v118
    %129 = vmatprep.subr.mxu0 0.0
    %130 = vmatpush1.xpose.msra.mxu0 %v121
    %131 = vmatprep.subr.mxu0 0.0
    %132 = vmatpush1.xpose.msra.mxu0 0.0
    %133 = vmatprep.subr.mxu0 0.0
    %134 = vmatpush1.xpose.msra.mxu0 0.0
    %135 = vmatprep.subr.mxu0 0.0
    %136 = vmatpush1.xpose.msra.mxu0 0.0
    %137 = vmatprep.subr.mxu0 0.0
    %138 = vmatpush1.xpose.msra.mxu0 0.0
    %139 = vmatprep.subr.mxu0 0.0
    %140 = vmatpush1.xpose.msra.mxu0 0.0
    %141 = vmatprep.subr.mxu0 0.0
    %142 = vmatpush1.xpose.msra.mxu0 0.0
    %143 = vmatprep.subr.mxu0 0.0
    %144 = vmatpush1.xpose.msra.mxu0 0.0
    %145 = vmatprep.subr.mxu0 0.0
    %146 = vmatpush1.xpose.msra.mxu0 0.0
    %147 = vmatprep.subr.mxu0 0.0
    %148 = vmatpush1.xpose.msra.mxu0 0.0
    %149 = vmatprep.subr.mxu0 0.0
    %150 = vmatpush1.xpose.msra.mxu0 0.0
    %151 = vmatprep.subr.mxu0 0.0
    %152 = vmatpush1.xpose.msra.mxu0 0.0
    %153 = vmatprep.subr.mxu0 0.0
    %154 = vmatpush1.xpose.msra.mxu0 0.0
    %155 = vmatprep.subr.mxu0 0.0
    %156 = vmatpush1.xpose.msra.mxu0 0.0
    %157 = vmatprep.subr.mxu0 0.0
    %158 = vmatpush1.xpose.msra.mxu0 0.0
    %159 = vmatprep.subr.mxu0 0.0
    %160 = vmatpush1.xpose.msra.mxu0 0.0
    %161 = vmatprep.subr.mxu0 0.0
    %162 = vmatpush1.xpose.msra.mxu0 0.0
    %163 = vmatprep.subr.mxu0 0.0
    %164 = vmatpush1.xpose.msra.mxu0 0.0
    %165 = vmatprep.subr.mxu0 0.0
    %166 = vmatpush1.xpose.msra.mxu0 0.0
    %167 = vmatprep.subr.mxu0 0.0
    %168 = vmatpush1.xpose.msra.mxu0 0.0
    %169 = vmatprep.subr.mxu0 0.0
    %170 = vmatpush1.xpose.msra.mxu0 0.0
    %171 = vmatprep.subr.mxu0 0.0
    %172 = vmatpush1.xpose.msra.mxu0 0.0
    %173 = vmatprep.subr.mxu0 0.0
    %174 = vmatpush1.xpose.msra.mxu0 0.0
    %175 = vmatprep.subr.mxu0 0.0
    %176 = vmatpush1.xpose.msra.mxu0 0.0
    %177 = vmatprep.subr.mxu0 0.0
    %178 = vmatpush1.xpose.msra.mxu0 0.0
    %179 = vmatprep.subr.mxu0 0.0
    %180 = vmatpush1.xpose.msra.mxu0 0.0
    %181 = vmatprep.subr.mxu0 0.0
    %182 = vmatpush1.xpose.msra.mxu0 0.0
    %183 = vmatprep.subr.mxu0 0.0
    %184 = vmatpush1.xpose.msra.mxu0 0.0
    %185 = vmatprep.subr.mxu0 0.0
    %186 = vmatpush1.xpose.msra.mxu0 0.0
    %187 = vmatprep.mubr.f32.mxu0 0.0
    %188 = vmatmul.mubr.f32.gmra.mrb[0].mxu0 %v106
    %v189 = vpop.f32.mrb[0].mxu0
    %v190 = vadd.f32 %v102, %v189
    %v191 = vpop.f32.mrb[0].mxu0
    %192 = vmatprep.mubr.f32.mxu0 0.0
    %193 = vmatmul.mubr.f32.gmra.mrb[0].mxu0 %v109
    %v194 = vpop.f32.mrb[0].mxu0
    %v195 = vadd.f32 %v102, %v194
    %v196 = vpop.f32.mrb[0].mxu0
    %197 = vdwg.mxu0
    %vm198 = vcmask 261120
    %v200 = vsel %vm198, %v190, 0
    %v203 = vsel %vm198, %v195, 0
    %v206 = vsel %vm198, %v89, 0
    %v209 = vsel %vm198, %v90, 0
    %211 = vmatprep.subr.mxu0 0.0
    %212 = vmatpush1.xpose.msra.mxu0 %v206
    %213 = vmatprep.subr.mxu0 0.0
    %214 = vmatpush1.xpose.msra.mxu0 %v209
    %215 = vmatprep.subr.mxu0 0.0
    %216 = vmatpush1.xpose.msra.mxu0 0.0
    %217 = vmatprep.subr.mxu0 0.0
    %218 = vmatpush1.xpose.msra.mxu0 0.0
    %219 = vmatprep.subr.mxu0 0.0
    %220 = vmatpush1.xpose.msra.mxu0 0.0
    %221 = vmatprep.subr.mxu0 0.0
    %222 = vmatpush1.xpose.msra.mxu0 0.0
    %223 = vmatprep.subr.mxu0 0.0
    %224 = vmatpush1.xpose.msra.mxu0 0.0
    %225 = vmatprep.subr.mxu0 0.0
    %226 = vmatpush1.xpose.msra.mxu0 0.0
    %227 = vmatprep.subr.mxu0 0.0
    %228 = vmatpush1.xpose.msra.mxu0 0.0
    %229 = vmatprep.subr.mxu0 0.0
    %230 = vmatpush1.xpose.msra.mxu0 0.0
    %231 = vmatprep.subr.mxu0 0.0
    %232 = vmatpush1.xpose.msra.mxu0 0.0
    %233 = vmatprep.subr.mxu0 0.0
    %234 = vmatpush1.xpose.msra.mxu0 0.0
    %235 = vmatprep.subr.mxu0 0.0
    %236 = vmatpush1.xpose.msra.mxu0 0.0
    %237 = vmatprep.subr.mxu0 0.0
    %238 = vmatpush1.xpose.msra.mxu0 0.0
    %239 = vmatprep.subr.mxu0 0.0
    %240 = vmatpush1.xpose.msra.mxu0 0.0
    %241 = vmatprep.subr.mxu0 0.0
    %242 = vmatpush1.xpose.msra.mxu0 0.0
    %243 = vmatprep.subr.mxu0 0.0
    %244 = vmatpush1.xpose.msra.mxu0 0.0
    %245 = vmatprep.subr.mxu0 0.0
    %246 = vmatpush1.xpose.msra.mxu0 0.0
    %247 = vmatprep.subr.mxu0 0.0
    %248 = vmatpush1.xpose.msra.mxu0 0.0
    %249 = vmatprep.subr.mxu0 0.0
    %250 = vmatpush1.xpose.msra.mxu0 0.0
    %251 = vmatprep.subr.mxu0 0.0
    %252 = vmatpush1.xpose.msra.mxu0 0.0
    %253 = vmatprep.subr.mxu0 0.0
    %254 = vmatpush1.xpose.msra.mxu0 0.0
    %255 = vmatprep.subr.mxu0 0.0
    %256 = vmatpush1.xpose.msra.mxu0 0.0
    %257 = vmatprep.subr.mxu0 0.0
    %258 = vmatpush1.xpose.msra.mxu0 0.0
    %259 = vmatprep.subr.mxu0 0.0
    %260 = vmatpush1.xpose.msra.mxu0 0.0
    %261 = vmatprep.subr.mxu0 0.0
    %262 = vmatpush1.xpose.msra.mxu0 0.0
    %263 = vmatprep.subr.mxu0 0.0
    %264 = vmatpush1.xpose.msra.mxu0 0.0
    %265 = vmatprep.subr.mxu0 0.0
    %266 = vmatpush1.xpose.msra.mxu0 0.0
    %267 = vmatprep.subr.mxu0 0.0
    %268 = vmatpush1.xpose.msra.mxu0 0.0
    %269 = vmatprep.subr.mxu0 0.0
    %270 = vmatpush1.xpose.msra.mxu0 0.0
    %271 = vmatprep.subr.mxu0 0.0
    %272 = vmatpush1.xpose.msra.mxu0 0.0
    %273 = vmatprep.subr.mxu0 0.0
    %274 = vmatpush1.xpose.msra.mxu0 0.0
    %275 = vmatprep.mubr.f32.mxu0 0.0
    %276 = vmatmul.mubr.f32.gmra.mrb[0].mxu0 %v200
    %v277 = vpop.f32.mrb[0].mxu0
    %v278 = vadd.f32 0.0, %v277
    %v279 = vpop.f32.mrb[0].mxu0
    %280 = vmatprep.mubr.f32.mxu0 0.0
    %281 = vmatmul.mubr.f32.gmra.mrb[0].mxu0 %v203
    %v282 = vpop.f32.mrb[0].mxu0
    %v283 = vadd.f32 0.0, %v282
    %v284 = vpop.f32.mrb[0].mxu0
    %285 = vdwg.mxu0
    %v286 = vld [vmem:[#allocation9] sm:$0xff]
    %v287 = vld [vmem:[#allocation9 + $0x8] sm:$0xff]
    %vm288 = vcmask 130048
    %v290 = vsel %vm288, %v278, 0
    %v293 = vsel %vm288, %v283, 0
    %295 = vmatprep.subr.mxu0 0.0
    %296 = vmatpush1.msra.mxu0 %v286
    %297 = vmatprep.subr.mxu0 0.0
    %298 = vmatpush1.msra.mxu0 %v287
    %299 = vmatprep.subr.mxu0 0.0
    %300 = vmatpush1.msra.mxu0 0.0
    %301 = vmatprep.subr.mxu0 0.0
    %302 = vmatpush1.msra.mxu0 0.0
    %303 = vmatprep.subr.mxu0 0.0
    %304 = vmatpush1.msra.mxu0 0.0
    %305 = vmatprep.subr.mxu0 0.0
    %306 = vmatpush1.msra.mxu0 0.0
    %307 = vmatprep.subr.mxu0 0.0
    %308 = vmatpush1.msra.mxu0 0.0
    %309 = vmatprep.subr.mxu0 0.0
    %310 = vmatpush1.msra.mxu0 0.0
    %311 = vmatprep.subr.mxu0 0.0
    %312 = vmatpush1.msra.mxu0 0.0
    %313 = vmatprep.subr.mxu0 0.0
    %314 = vmatpush1.msra.mxu0 0.0
    %315 = vmatprep.subr.mxu0 0.0
    %316 = vmatpush1.msra.mxu0 0.0
    %317 = vmatprep.subr.mxu0 0.0
    %318 = vmatpush1.msra.mxu0 0.0
    %319 = vmatprep.subr.mxu0 0.0
    %320 = vmatpush1.msra.mxu0 0.0
    %321 = vmatprep.subr.mxu0 0.0
    %322 = vmatpush1.msra.mxu0 0.0
    %323 = vmatprep.subr.mxu0 0.0
    %324 = vmatpush1.msra.mxu0 0.0
    %325 = vmatprep.subr.mxu0 0.0
    %326 = vmatpush1.msra.mxu0 0.0
    %327 = vmatprep.subr.mxu0 0.0
    %328 = vmatpush1.msra.mxu0 0.0
    %329 = vmatprep.subr.mxu0 0.0
    %330 = vmatpush1.msra.mxu0 0.0
    %331 = vmatprep.subr.mxu0 0.0
    %332 = vmatpush1.msra.mxu0 0.0
    %333 = vmatprep.subr.mxu0 0.0
    %334 = vmatpush1.msra.mxu0 0.0
    %335 = vmatprep.subr.mxu0 0.0
    %336 = vmatpush1.msra.mxu0 0.0
    %337 = vmatprep.subr.mxu0 0.0
    %338 = vmatpush1.msra.mxu0 0.0
    %339 = vmatprep.subr.mxu0 0.0
    %340 = vmatpush1.msra.mxu0 0.0
    %341 = vmatprep.subr.mxu0 0.0
    %342 = vmatpush1.msra.mxu0 0.0
    %343 = vmatprep.subr.mxu0 0.0
    %344 = vmatpush1.msra.mxu0 0.0
    %345 = vmatprep.subr.mxu0 0.0
    %346 = vmatpush1.msra.mxu0 0.0
    %347 = vmatprep.subr.mxu0 0.0
    %348 = vmatpush1.msra.mxu0 0.0
    %349 = vmatprep.subr.mxu0 0.0
    %350 = vmatpush1.msra.mxu0 0.0
    %351 = vmatprep.subr.mxu0 0.0
    %352 = vmatpush1.msra.mxu0 0.0
    %353 = vmatprep.subr.mxu0 0.0
    %354 = vmatpush1.msra.mxu0 0.0
    %355 = vmatprep.subr.mxu0 0.0
    %356 = vmatpush1.msra.mxu0 0.0
    %357 = vmatprep.subr.mxu0 0.0
    %358 = vmatpush1.msra.mxu0 0.0
    %359 = vmatprep.mubr.f32.mxu0 0.0
    %360 = vmatmul.mubr.f32.gmra.mrb[0].mxu0 %v290
    %v361 = vpop.f32.mrb[0].mxu0
    %v362 = vadd.f32 0.0, %v361
    %v363 = vpop.f32.mrb[0].mxu0
    %364 = vmatprep.mubr.f32.mxu0 0.0
    %365 = vmatmul.mubr.f32.gmra.mrb[0].mxu0 %v293
    %v366 = vpop.f32.mrb[0].mxu0
    %v367 = vadd.f32 0.0, %v366
    %v368 = vpop.f32.mrb[0].mxu0
    %369 = vdwg.mxu0
    %v370 = vld [vmem:[%s6] sm:$0xff]
    %v371 = vld [vmem:[%s6 + $0x8] sm:$0xff]
    %v372 = vld [vmem:[%s5] sm:$0x1]
    %v374 = vlaneseq
    %v375 = vshrl.u32 %v374, 7
    %v376 = vsub.s32 0, %v375
    %v377 = vrot.slane %v372, %v376
    %v380 = vsel %vm288, %v370, 0
    %v383 = vsel %vm288, %v371, 0
    %385 = vmatprep.subr.mxu0 0.0
    %386 = vmatpush1.msra.mxu0 %v362
    %387 = vmatprep.subr.mxu0 0.0
    %388 = vmatpush1.msra.mxu0 %v367
    %389 = vmatprep.subr.mxu0 0.0
    %390 = vmatpush1.msra.mxu0 0.0
    %391 = vmatprep.subr.mxu0 0.0
    %392 = vmatpush1.msra.mxu0 0.0
    %393 = vmatprep.subr.mxu0 0.0
    %394 = vmatpush1.msra.mxu0 0.0
    %395 = vmatprep.subr.mxu0 0.0
    %396 = vmatpush1.msra.mxu0 0.0
    %397 = vmatprep.subr.mxu0 0.0
    %398 = vmatpush1.msra.mxu0 0.0
    %399 = vmatprep.subr.mxu0 0.0
    %400 = vmatpush1.msra.mxu0 0.0
    %401 = vmatprep.subr.mxu0 0.0
    %402 = vmatpush1.msra.mxu0 0.0
    %403 = vmatprep.subr.mxu0 0.0
    %404 = vmatpush1.msra.mxu0 0.0
    %405 = vmatprep.subr.mxu0 0.0
    %406 = vmatpush1.msra.mxu0 0.0
    %407 = vmatprep.subr.mxu0 0.0
    %408 = vmatpush1.msra.mxu0 0.0
    %409 = vmatprep.subr.mxu0 0.0
    %410 = vmatpush1.msra.mxu0 0.0
    %411 = vmatprep.subr.mxu0 0.0
    %412 = vmatpush1.msra.mxu0 0.0
    %413 = vmatprep.subr.mxu0 0.0
    %414 = vmatpush1.msra.mxu0 0.0
    %415 = vmatprep.subr.mxu0 0.0
    %416 = vmatpush1.msra.mxu0 0.0
    %417 = vmatprep.subr.mxu0 0.0
    %418 = vmatpush1.msra.mxu0 0.0
    %419 = vmatprep.subr.mxu0 0.0
    %420 = vmatpush1.msra.mxu0 0.0
    %421 = vmatprep.subr.mxu0 0.0
    %422 = vmatpush1.msra.mxu0 0.0
    %423 = vmatprep.subr.mxu0 0.0
    %424 = vmatpush1.msra.mxu0 0.0
    %425 = vmatprep.subr.mxu0 0.0
    %426 = vmatpush1.msra.mxu0 0.0
    %427 = vmatprep.subr.mxu0 0.0
    %428 = vmatpush1.msra.mxu0 0.0
    %429 = vmatprep.subr.mxu0 0.0
    %430 = vmatpush1.msra.mxu0 0.0
    %431 = vmatprep.subr.mxu0 0.0
    %432 = vmatpush1.msra.mxu0 0.0
    %433 = vmatprep.subr.mxu0 0.0
    %434 = vmatpush1.msra.mxu0 0.0
    %435 = vmatprep.subr.mxu0 0.0
    %436 = vmatpush1.msra.mxu0 0.0
    %437 = vmatprep.subr.mxu0 0.0
    %438 = vmatpush1.msra.mxu0 0.0
    %439 = vmatprep.subr.mxu0 0.0
    %440 = vmatpush1.msra.mxu0 0.0
    %441 = vmatprep.subr.mxu0 0.0
    %442 = vmatpush1.msra.mxu0 0.0
    %443 = vmatprep.subr.mxu0 0.0
    %444 = vmatpush1.msra.mxu0 0.0
    %445 = vmatprep.subr.mxu0 0.0
    %446 = vmatpush1.msra.mxu0 0.0
    %447 = vmatprep.subr.mxu0 0.0
    %448 = vmatpush1.msra.mxu0 0.0
    %449 = vmatprep.mubr.f32.mxu0 0.0
    %450 = vmatmul.mubr.f32.gmra.mrb[0].mxu0 %v380
    %v451 = vpop.f32.mrb[0].mxu0
    %v452 = vadd.f32 %v377, %v451
    %v453 = vpop.f32.mrb[0].mxu0
    %454 = vmatprep.mubr.f32.mxu0 0.0
    %455 = vmatmul.mubr.f32.gmra.mrb[0].mxu0 %v383
    %v456 = vpop.f32.mrb[0].mxu0
    %v457 = vadd.f32 %v377, %v456
    %v458 = vpop.f32.mrb[0].mxu0
    %459 = vdwg.mxu0
    %v460 = vmul.f32 %v452, 0.01
    %v461 = vmul.f32 %v457, 0.01
    %v462 = vmax.f32 %v452, %v460
    %v463 = vmax.f32 %v457, %v461
    %s464 = scalar_lea.vmem [#allocation9], 16
    %v465 = vld [vmem:[%s464] sm:$0xff]
    %v466 = vld [vmem:[%s464 + $0x8] sm:$0xff]
    %v468 = vsel %vm288, %v462, 0
    %v471 = vsel %vm288, %v463, 0
    %473 = vmatprep.subr.mxu0 0.0
    %474 = vmatpush1.msra.mxu0 %v465
    %475 = vmatprep.subr.mxu0 0.0
    %476 = vmatpush1.msra.mxu0 %v466
    %477 = vmatprep.subr.mxu0 0.0
    %478 = vmatpush1.msra.mxu0 0.0
    %479 = vmatprep.subr.mxu0 0.0
    %480 = vmatpush1.msra.mxu0 0.0
    %481 = vmatprep.subr.mxu0 0.0
    %482 = vmatpush1.msra.mxu0 0.0
    %483 = vmatprep.subr.mxu0 0.0
    %484 = vmatpush1.msra.mxu0 0.0
    %485 = vmatprep.subr.mxu0 0.0
    %486 = vmatpush1.msra.mxu0 0.0
    %487 = vmatprep.subr.mxu0 0.0
    %488 = vmatpush1.msra.mxu0 0.0
    %489 = vmatprep.subr.mxu0 0.0
    %490 = vmatpush1.msra.mxu0 0.0
    %491 = vmatprep.subr.mxu0 0.0
    %492 = vmatpush1.msra.mxu0 0.0
    %493 = vmatprep.subr.mxu0 0.0
    %494 = vmatpush1.msra.mxu0 0.0
    %495 = vmatprep.subr.mxu0 0.0
    %496 = vmatpush1.msra.mxu0 0.0
    %497 = vmatprep.subr.mxu0 0.0
    %498 = vmatpush1.msra.mxu0 0.0
    %499 = vmatprep.subr.mxu0 0.0
    %500 = vmatpush1.msra.mxu0 0.0
    %501 = vmatprep.subr.mxu0 0.0
    %502 = vmatpush1.msra.mxu0 0.0
    %503 = vmatprep.subr.mxu0 0.0
    %504 = vmatpush1.msra.mxu0 0.0
    %505 = vmatprep.subr.mxu0 0.0
    %506 = vmatpush1.msra.mxu0 0.0
    %507 = vmatprep.subr.mxu0 0.0
    %508 = vmatpush1.msra.mxu0 0.0
    %509 = vmatprep.subr.mxu0 0.0
    %510 = vmatpush1.msra.mxu0 0.0
    %511 = vmatprep.subr.mxu0 0.0
    %512 = vmatpush1.msra.mxu0 0.0
    %513 = vmatprep.subr.mxu0 0.0
    %514 = vmatpush1.msra.mxu0 0.0
    %515 = vmatprep.subr.mxu0 0.0
    %516 = vmatpush1.msra.mxu0 0.0
    %517 = vmatprep.subr.mxu0 0.0
    %518 = vmatpush1.msra.mxu0 0.0
    %519 = vmatprep.subr.mxu0 0.0
    %520 = vmatpush1.msra.mxu0 0.0
    %521 = vmatprep.subr.mxu0 0.0
    %522 = vmatpush1.msra.mxu0 0.0
    %523 = vmatprep.subr.mxu0 0.0
    %524 = vmatpush1.msra.mxu0 0.0
    %525 = vmatprep.subr.mxu0 0.0
    %526 = vmatpush1.msra.mxu0 0.0
    %527 = vmatprep.subr.mxu0 0.0
    %528 = vmatpush1.msra.mxu0 0.0
    %529 = vmatprep.subr.mxu0 0.0
    %530 = vmatpush1.msra.mxu0 0.0
    %531 = vmatprep.subr.mxu0 0.0
    %532 = vmatpush1.msra.mxu0 0.0
    %533 = vmatprep.subr.mxu0 0.0
    %534 = vmatpush1.msra.mxu0 0.0
    %535 = vmatprep.subr.mxu0 0.0
    %536 = vmatpush1.msra.mxu0 0.0
    %537 = vmatprep.mubr.f32.mxu0 0.0
    %538 = vmatmul.mubr.f32.gmra.mrb[0].mxu0 %v468
    %v539 = vpop.f32.mrb[0].mxu0
    %v540 = vadd.f32 0.0, %v539
    %v541 = vpop.f32.mrb[0].mxu0
    %542 = vmatprep.mubr.f32.mxu0 0.0
    %543 = vmatmul.mubr.f32.gmra.mrb[0].mxu0 %v471
    %v544 = vpop.f32.mrb[0].mxu0
    %v545 = vadd.f32 0.0, %v544
    %v546 = vpop.f32.mrb[0].mxu0
    %547 = vdwg.mxu0
    %s548 = scalar_lea.vmem %s5, 1
    %v549 = vld [vmem:[%s548] sm:$0x1]
    %v551 = vlaneseq
    %v552 = vshrl.u32 %v551, 7
    %v553 = vsub.s32 0, %v552
    %v554 = vrot.slane %v549, %v553
    %556 = vmatprep.subr.mxu0 0.0
    %557 = vmatpush1.msra.mxu0 %v540
    %558 = vmatprep.subr.mxu0 0.0
    %559 = vmatpush1.msra.mxu0 %v545
    %560 = vmatprep.subr.mxu0 0.0
    %561 = vmatpush1.msra.mxu0 0.0
    %562 = vmatprep.subr.mxu0 0.0
    %563 = vmatpush1.msra.mxu0 0.0
    %564 = vmatprep.subr.mxu0 0.0
    %565 = vmatpush1.msra.mxu0 0.0
    %566 = vmatprep.subr.mxu0 0.0
    %567 = vmatpush1.msra.mxu0 0.0
    %568 = vmatprep.subr.mxu0 0.0
    %569 = vmatpush1.msra.mxu0 0.0
    %570 = vmatprep.subr.mxu0 0.0
    %571 = vmatpush1.msra.mxu0 0.0
    %572 = vmatprep.subr.mxu0 0.0
    %573 = vmatpush1.msra.mxu0 0.0
    %574 = vmatprep.subr.mxu0 0.0
    %575 = vmatpush1.msra.mxu0 0.0
    %576 = vmatprep.subr.mxu0 0.0
    %577 = vmatpush1.msra.mxu0 0.0
    %578 = vmatprep.subr.mxu0 0.0
    %579 = vmatpush1.msra.mxu0 0.0
    %580 = vmatprep.subr.mxu0 0.0
    %581 = vmatpush1.msra.mxu0 0.0
    %582 = vmatprep.subr.mxu0 0.0
    %583 = vmatpush1.msra.mxu0 0.0
    %584 = vmatprep.subr.mxu0 0.0
    %585 = vmatpush1.msra.mxu0 0.0
    %586 = vmatprep.subr.mxu0 0.0
    %587 = vmatpush1.msra.mxu0 0.0
    %588 = vmatprep.subr.mxu0 0.0
    %589 = vmatpush1.msra.mxu0 0.0
    %590 = vmatprep.subr.mxu0 0.0
    %591 = vmatpush1.msra.mxu0 0.0
    %592 = vmatprep.subr.mxu0 0.0
    %593 = vmatpush1.msra.mxu0 0.0
    %594 = vmatprep.subr.mxu0 0.0
    %595 = vmatpush1.msra.mxu0 0.0
    %596 = vmatprep.subr.mxu0 0.0
    %597 = vmatpush1.msra.mxu0 0.0
    %598 = vmatprep.subr.mxu0 0.0
    %599 = vmatpush1.msra.mxu0 0.0
    %600 = vmatprep.subr.mxu0 0.0
    %601 = vmatpush1.msra.mxu0 0.0
    %602 = vmatprep.subr.mxu0 0.0
    %603 = vmatpush1.msra.mxu0 0.0
    %604 = vmatprep.subr.mxu0 0.0
    %605 = vmatpush1.msra.mxu0 0.0
    %606 = vmatprep.subr.mxu0 0.0
    %607 = vmatpush1.msra.mxu0 0.0
    %608 = vmatprep.subr.mxu0 0.0
    %609 = vmatpush1.msra.mxu0 0.0
    %610 = vmatprep.subr.mxu0 0.0
    %611 = vmatpush1.msra.mxu0 0.0
    %612 = vmatprep.subr.mxu0 0.0
    %613 = vmatpush1.msra.mxu0 0.0
    %614 = vmatprep.subr.mxu0 0.0
    %615 = vmatpush1.msra.mxu0 0.0
    %616 = vmatprep.subr.mxu0 0.0
    %617 = vmatpush1.msra.mxu0 0.0
    %618 = vmatprep.subr.mxu0 0.0
    %619 = vmatpush1.msra.mxu0 0.0
    %620 = vmatprep.mubr.f32.mxu0 0.0
    %621 = vmatmul.mubr.f32.gmra.mrb[0].mxu0 %v380
    %v622 = vpop.f32.mrb[0].mxu0
    %v623 = vadd.f32 %v554, %v622
    %v624 = vpop.f32.mrb[0].mxu0
    %625 = vmatprep.mubr.f32.mxu0 0.0
    %626 = vmatmul.mubr.f32.gmra.mrb[0].mxu0 %v383
    %v627 = vpop.f32.mrb[0].mxu0
    %v628 = vadd.f32 %v554, %v627
    %v629 = vpop.f32.mrb[0].mxu0
    %630 = vdwg.mxu0
    %v631 = vmul.f32 %v623, 0.01
    %v632 = vmul.f32 %v628, 0.01
    %v633 = vmax.f32 %v623, %v631
    %v634 = vmax.f32 %v628, %v632
    %s635 = scalar_lea.vmem [#allocation9], 32
    %v636 = vld [vmem:[%s635] sm:$0xff]
    %v637 = vld [vmem:[%s635 + $0x8] sm:$0xff]
    %v639 = vsel %vm288, %v633, 0
    %v642 = vsel %vm288, %v634, 0
    %644 = vmatprep.subr.mxu0 0.0
    %645 = vmatpush1.msra.mxu0 %v636
    %646 = vmatprep.subr.mxu0 0.0
    %647 = vmatpush1.msra.mxu0 %v637
    %648 = vmatprep.subr.mxu0 0.0
    %649 = vmatpush1.msra.mxu0 0.0
    %650 = vmatprep.subr.mxu0 0.0
    %651 = vmatpush1.msra.mxu0 0.0
    %652 = vmatprep.subr.mxu0 0.0
    %653 = vmatpush1.msra.mxu0 0.0
    %654 = vmatprep.subr.mxu0 0.0
    %655 = vmatpush1.msra.mxu0 0.0
    %656 = vmatprep.subr.mxu0 0.0
    %657 = vmatpush1.msra.mxu0 0.0
    %658 = vmatprep.subr.mxu0 0.0
    %659 = vmatpush1.msra.mxu0 0.0
    %660 = vmatprep.subr.mxu0 0.0
    %661 = vmatpush1.msra.mxu0 0.0
    %662 = vmatprep.subr.mxu0 0.0
    %663 = vmatpush1.msra.mxu0 0.0
    %664 = vmatprep.subr.mxu0 0.0
    %665 = vmatpush1.msra.mxu0 0.0
    %666 = vmatprep.subr.mxu0 0.0
    %667 = vmatpush1.msra.mxu0 0.0
    %668 = vmatprep.subr.mxu0 0.0
    %669 = vmatpush1.msra.mxu0 0.0
    %670 = vmatprep.subr.mxu0 0.0
    %671 = vmatpush1.msra.mxu0 0.0
    %672 = vmatprep.subr.mxu0 0.0
    %673 = vmatpush1.msra.mxu0 0.0
    %674 = vmatprep.subr.mxu0 0.0
    %675 = vmatpush1.msra.mxu0 0.0
    %676 = vmatprep.subr.mxu0 0.0
    %677 = vmatpush1.msra.mxu0 0.0
    %678 = vmatprep.subr.mxu0 0.0
    %679 = vmatpush1.msra.mxu0 0.0
    %680 = vmatprep.subr.mxu0 0.0
    %681 = vmatpush1.msra.mxu0 0.0
    %682 = vmatprep.subr.mxu0 0.0
    %683 = vmatpush1.msra.mxu0 0.0
    %684 = vmatprep.subr.mxu0 0.0
    %685 = vmatpush1.msra.mxu0 0.0
    %686 = vmatprep.subr.mxu0 0.0
    %687 = vmatpush1.msra.mxu0 0.0
    %688 = vmatprep.subr.mxu0 0.0
    %689 = vmatpush1.msra.mxu0 0.0
    %690 = vmatprep.subr.mxu0 0.0
    %691 = vmatpush1.msra.mxu0 0.0
    %692 = vmatprep.subr.mxu0 0.0
    %693 = vmatpush1.msra.mxu0 0.0
    %694 = vmatprep.subr.mxu0 0.0
    %695 = vmatpush1.msra.mxu0 0.0
    %696 = vmatprep.subr.mxu0 0.0
    %697 = vmatpush1.msra.mxu0 0.0
    %698 = vmatprep.subr.mxu0 0.0
    %699 = vmatpush1.msra.mxu0 0.0
    %700 = vmatprep.subr.mxu0 0.0
    %701 = vmatpush1.msra.mxu0 0.0
    %702 = vmatprep.subr.mxu0 0.0
    %703 = vmatpush1.msra.mxu0 0.0
    %704 = vmatprep.subr.mxu0 0.0
    %705 = vmatpush1.msra.mxu0 0.0
    %706 = vmatprep.subr.mxu0 0.0
    %707 = vmatpush1.msra.mxu0 0.0
    %708 = vmatprep.mubr.f32.mxu0 0.0
    %709 = vmatmul.mubr.f32.gmra.mrb[0].mxu0 %v639
    %v710 = vpop.f32.mrb[0].mxu0
    %v711 = vadd.f32 0.0, %v710
    %v712 = vpop.f32.mrb[0].mxu0
    %713 = vmatprep.mubr.f32.mxu0 0.0
    %714 = vmatmul.mubr.f32.gmra.mrb[0].mxu0 %v642
    %v715 = vpop.f32.mrb[0].mxu0
    %v716 = vadd.f32 0.0, %v715
    %v717 = vpop.f32.mrb[0].mxu0
    %718 = vdwg.mxu0
    %s719 = scalar_lea.vmem %s5, 2
    %v720 = vld [vmem:[%s719] sm:$0x1]
    %v722 = vlaneseq
    %v723 = vshrl.u32 %v722, 7
    %v724 = vsub.s32 0, %v723
    %v725 = vrot.slane %v720, %v724
    %727 = vmatprep.subr.mxu0 0.0
    %728 = vmatpush1.msra.mxu0 %v711
    %729 = vmatprep.subr.mxu0 0.0
    %730 = vmatpush1.msra.mxu0 %v716
    %731 = vmatprep.subr.mxu0 0.0
    %732 = vmatpush1.msra.mxu0 0.0
    %733 = vmatprep.subr.mxu0 0.0
    %734 = vmatpush1.msra.mxu0 0.0
    %735 = vmatprep.subr.mxu0 0.0
    %736 = vmatpush1.msra.mxu0 0.0
    %737 = vmatprep.subr.mxu0 0.0
    %738 = vmatpush1.msra.mxu0 0.0
    %739 = vmatprep.subr.mxu0 0.0
    %740 = vmatpush1.msra.mxu0 0.0
    %741 = vmatprep.subr.mxu0 0.0
    %742 = vmatpush1.msra.mxu0 0.0
    %743 = vmatprep.subr.mxu0 0.0
    %744 = vmatpush1.msra.mxu0 0.0
    %745 = vmatprep.subr.mxu0 0.0
    %746 = vmatpush1.msra.mxu0 0.0
    %747 = vmatprep.subr.mxu0 0.0
    %748 = vmatpush1.msra.mxu0 0.0
    %749 = vmatprep.subr.mxu0 0.0
    %750 = vmatpush1.msra.mxu0 0.0
    %751 = vmatprep.subr.mxu0 0.0
    %752 = vmatpush1.msra.mxu0 0.0
    %753 = vmatprep.subr.mxu0 0.0
    %754 = vmatpush1.msra.mxu0 0.0
    %755 = vmatprep.subr.mxu0 0.0
    %756 = vmatpush1.msra.mxu0 0.0
    %757 = vmatprep.subr.mxu0 0.0
    %758 = vmatpush1.msra.mxu0 0.0
    %759 = vmatprep.subr.mxu0 0.0
    %760 = vmatpush1.msra.mxu0 0.0
    %761 = vmatprep.subr.mxu0 0.0
    %762 = vmatpush1.msra.mxu0 0.0
    %763 = vmatprep.subr.mxu0 0.0
    %764 = vmatpush1.msra.mxu0 0.0
    %765 = vmatprep.subr.mxu0 0.0
    %766 = vmatpush1.msra.mxu0 0.0
    %767 = vmatprep.subr.mxu0 0.0
    %768 = vmatpush1.msra.mxu0 0.0
    %769 = vmatprep.subr.mxu0 0.0
    %770 = vmatpush1.msra.mxu0 0.0
    %771 = vmatprep.subr.mxu0 0.0
    %772 = vmatpush1.msra.mxu0 0.0
    %773 = vmatprep.subr.mxu0 0.0
    %774 = vmatpush1.msra.mxu0 0.0
    %775 = vmatprep.subr.mxu0 0.0
    %776 = vmatpush1.msra.mxu0 0.0
    %777 = vmatprep.subr.mxu0 0.0
    %778 = vmatpush1.msra.mxu0 0.0
    %779 = vmatprep.subr.mxu0 0.0
    %780 = vmatpush1.msra.mxu0 0.0
    %781 = vmatprep.subr.mxu0 0.0
    %782 = vmatpush1.msra.mxu0 0.0
    %783 = vmatprep.subr.mxu0 0.0
    %784 = vmatpush1.msra.mxu0 0.0
    %785 = vmatprep.subr.mxu0 0.0
    %786 = vmatpush1.msra.mxu0 0.0
    %787 = vmatprep.subr.mxu0 0.0
    %788 = vmatpush1.msra.mxu0 0.0
    %789 = vmatprep.subr.mxu0 0.0
    %790 = vmatpush1.msra.mxu0 0.0
    %791 = vmatprep.mubr.f32.mxu0 0.0
    %792 = vmatmul.mubr.f32.gmra.mrb[0].mxu0 %v380
    %v793 = vpop.f32.mrb[0].mxu0
    %v794 = vadd.f32 %v725, %v793
    %v795 = vpop.f32.mrb[0].mxu0
    %796 = vmatprep.mubr.f32.mxu0 0.0
    %797 = vmatmul.mubr.f32.gmra.mrb[0].mxu0 %v383
    %v798 = vpop.f32.mrb[0].mxu0
    %v799 = vadd.f32 %v725, %v798
    %v800 = vpop.f32.mrb[0].mxu0
    %801 = vdwg.mxu0
    %v802 = vmul.f32 %v794, 0.01
    %v803 = vmul.f32 %v799, 0.01
    %v804 = vmax.f32 %v794, %v802
    %v805 = vmax.f32 %v799, %v803
    %v806 = vld [vmem:[%s7] sm:$0x3]
    %s807 = sld [smem:[#allocation2]]
    %v808 = vstv %s807
    %v810 = vsel %vm288, %v806, 0
    %v813 = vsel %vm288, %v804, 0
    %v816 = vsel %vm288, %v805, 0
    %818 = vmatprep.subr.mxu0 0.0
    %819 = vmatpush1.xpose.msra.mxu0 %v813
    %820 = vmatprep.subr.mxu0 0.0
    %821 = vmatpush1.xpose.msra.mxu0 %v816
    %822 = vmatprep.subr.mxu0 0.0
    %823 = vmatpush1.xpose.msra.mxu0 0.0
    %824 = vmatprep.subr.mxu0 0.0
    %825 = vmatpush1.xpose.msra.mxu0 0.0
    %826 = vmatprep.subr.mxu0 0.0
    %827 = vmatpush1.xpose.msra.mxu0 0.0
    %828 = vmatprep.subr.mxu0 0.0
    %829 = vmatpush1.xpose.msra.mxu0 0.0
    %830 = vmatprep.subr.mxu0 0.0
    %831 = vmatpush1.xpose.msra.mxu0 0.0
    %832 = vmatprep.subr.mxu0 0.0
    %833 = vmatpush1.xpose.msra.mxu0 0.0
    %834 = vmatprep.subr.mxu0 0.0
    %835 = vmatpush1.xpose.msra.mxu0 0.0
    %836 = vmatprep.subr.mxu0 0.0
    %837 = vmatpush1.xpose.msra.mxu0 0.0
    %838 = vmatprep.subr.mxu0 0.0
    %839 = vmatpush1.xpose.msra.mxu0 0.0
    %840 = vmatprep.subr.mxu0 0.0
    %841 = vmatpush1.xpose.msra.mxu0 0.0
    %842 = vmatprep.subr.mxu0 0.0
    %843 = vmatpush1.xpose.msra.mxu0 0.0
    %844 = vmatprep.subr.mxu0 0.0
    %845 = vmatpush1.xpose.msra.mxu0 0.0
    %846 = vmatprep.subr.mxu0 0.0
    %847 = vmatpush1.xpose.msra.mxu0 0.0
    %848 = vmatprep.subr.mxu0 0.0
    %849 = vmatpush1.xpose.msra.mxu0 0.0
    %850 = vmatprep.subr.mxu0 0.0
    %851 = vmatpush1.xpose.msra.mxu0 0.0
    %852 = vmatprep.subr.mxu0 0.0
    %853 = vmatpush1.xpose.msra.mxu0 0.0
    %854 = vmatprep.subr.mxu0 0.0
    %855 = vmatpush1.xpose.msra.mxu0 0.0
    %856 = vmatprep.subr.mxu0 0.0
    %857 = vmatpush1.xpose.msra.mxu0 0.0
    %858 = vmatprep.subr.mxu0 0.0
    %859 = vmatpush1.xpose.msra.mxu0 0.0
    %860 = vmatprep.subr.mxu0 0.0
    %861 = vmatpush1.xpose.msra.mxu0 0.0
    %862 = vmatprep.subr.mxu0 0.0
    %863 = vmatpush1.xpose.msra.mxu0 0.0
    %864 = vmatprep.subr.mxu0 0.0
    %865 = vmatpush1.xpose.msra.mxu0 0.0
    %866 = vmatprep.subr.mxu0 0.0
    %867 = vmatpush1.xpose.msra.mxu0 0.0
    %868 = vmatprep.subr.mxu0 0.0
    %869 = vmatpush1.xpose.msra.mxu0 0.0
    %870 = vmatprep.subr.mxu0 0.0
    %871 = vmatpush1.xpose.msra.mxu0 0.0
    %872 = vmatprep.subr.mxu0 0.0
    %873 = vmatpush1.xpose.msra.mxu0 0.0
    %874 = vmatprep.subr.mxu0 0.0
    %875 = vmatpush1.xpose.msra.mxu0 0.0
    %876 = vmatprep.subr.mxu0 0.0
    %877 = vmatpush1.xpose.msra.mxu0 0.0
    %878 = vmatprep.subr.mxu0 0.0
    %879 = vmatpush1.xpose.msra.mxu0 0.0
    %880 = vmatprep.subr.mxu0 0.0
    %881 = vmatpush1.xpose.msra.mxu0 0.0
    %882 = vmatprep.mubr.f32.mxu0 0.0
    %883 = vmatmul.mubr.f32.gmra.mrb[0].mxu0 %v810
    %v884 = vpop.f32.mrb[0].mxu0
    %v885 = vadd.f32 %v808, %v884
    %v886 = vpop.f32.mrb[0].mxu0
    %887 = vdwg.mxu0
    %vm888 = vcmask 123904
    %889 = vst.msk [vmem:[#allocation11] sm:$0x3] %vm888, %v885
    // Predicated region
    $region54: #{tpu_custom_call.1} parent=1 // pred_check
      _
    $region55: #{tpu_custom_call.1} parent=1 // pred_check_branch
      %891 = sbr.rel (0) target = $region57
    $region56: #{tpu_custom_call.1} parent=1 // pred_region
      %s893 = ssub.s32 32, 32
      %894 = vsyncadd [#allocation5], %s893
      %s896 = sshll.u32 [#allocation11], 4
      %s897 = int_to_ptr.vmem [resolvable:$true] %s896
      %899 = dma.vmem_to_hbm [thread:$0]  %s897, 32, %s9, [#allocation5]
    $region57: #{tpu_custom_call.1} parent=1 // pred_fallthru
      _
    // Predicated region
    $region58: #{tpu_custom_call.1} parent=1 // pred_check
      _
    $region59: #{tpu_custom_call.1} parent=1 // pred_check_branch
      %901 = sbr.rel (0) target = $region61
    $region60: #{tpu_custom_call.1} parent=1 // pred_region
      %902 = dma.done [#allocation5], 32
    $region61: #{tpu_custom_call.1} parent=1 // pred_fallthru
      _
    %903 = vsyncpa [#allocation4], 1
    %904 = vsyncpa [#allocation7], 1
    %905 = vsyncpa [#allocation10], 1
    %906 = vsyncpa [#allocation5], 1

</llo_original>
